<compile_context>
chip_gen: v7x
topology: tpu7x:2x2x1
jax: 0.10.0
libtpu: 0.0.40
codegen_flags: <defaults>
</compile_context>

<pallas_src>
import jax
import jax.numpy as jnp
from jax.experimental import pallas as pl
from jax.experimental.pallas import tpu as pltpu

EPS = 1e-5
FEAT1 = 1024  # width of the first Linear layer (fixed by the module spec)


# --------------------------------------------------------------------------- #
# Device-aware sizing helpers
# --------------------------------------------------------------------------- #
def _vmem_capacity_bytes():
    try:
        return int(pltpu.get_tpu_info().vmem_capacity_bytes)
    except Exception:
        return 64 << 20  # conservative fallback (v7x per-TensorCore VMEM)


def _pick_tile(dim, cap_bytes):
    """Output-feature tile: 512 on 128 MiB parts (v5e/v6e), 256 on 64 MiB (v7x);
    fall back to 128 or the full dim for small / odd widths."""
    tmax = 512 if cap_bytes >= (96 << 20) else 256
    for t in (tmax, 256, 128):
        if dim % t == 0:
            return t
    return dim


def _vmem_limit(resident_bytes, cap_bytes):
    # resident already counts the x2 double buffers once; add headroom for
    # compiler scratch and cap below the physical capacity.
    return int(min(resident_bytes + (8 << 20), int(cap_bytes * 0.8)))


# --------------------------------------------------------------------------- #
# Kernels
# --------------------------------------------------------------------------- #
def _lin_bn_relu_kernel(x_ref, w1t_ref, g1_ref, be1_ref, h_ref):
    """Linear1 (bias cancelled by BN mean subtraction) -> BN1 -> ReLU, on one
    column slice of the 1024-wide hidden axis.  BN stats are per-feature, so a
    column tile is fully self-contained."""
    h = jnp.dot(x_ref[...], w1t_ref[...], preferred_element_type=jnp.float32)
    mean = jnp.mean(h, axis=0, keepdims=True)
    hc = h - mean
    var = jnp.mean(hc * hc, axis=0, keepdims=True)        # biased batch variance
    s = g1_ref[...] * jax.lax.rsqrt(var + EPS)            # fold gamma into inv-std
    h = hc * s + be1_ref[...]
    h_ref[...] = jnp.maximum(h, 0.0).astype(h_ref.dtype)  # bf16 store


def _lin_bn_kernel(h_ref, w2t_ref, g2_ref, be2_ref, o_ref):
    """Linear2 (bias cancelled) -> BN2 on one output-feature tile."""
    y = jnp.dot(h_ref[...], w2t_ref[...], preferred_element_type=jnp.float32)
    mean = jnp.mean(y, axis=0, keepdims=True)
    yc = y - mean
    var = jnp.mean(yc * yc, axis=0, keepdims=True)
    s = g2_ref[...] * jax.lax.rsqrt(var + EPS)
    o_ref[...] = (yc * s + be2_ref[...]).astype(o_ref.dtype)


# --------------------------------------------------------------------------- #
# Parameter prep (one-time, outside the hot path)
# --------------------------------------------------------------------------- #
def prepare_params(params):
    """Pre-transpose weights, cast MXU operands to bf16, reshape per-feature
    vectors to (1, N).  Linear biases are dropped: they cancel exactly under
    training-mode BatchNorm's batch-mean subtraction (NOT valid for eval-mode
    BN with running statistics)."""
    w1, b1, g1, be1, w2, b2, g2, be2 = params
    del b1, b2
    return dict(
        w1t=jnp.asarray(w1.T, jnp.bfloat16),          # (input_dim, 1024)
        g1=jnp.asarray(g1, jnp.float32)[None, :],     # (1, 1024)
        be1=jnp.asarray(be1, jnp.float32)[None, :],
        w2t=jnp.asarray(w2.T, jnp.bfloat16),          # (1024, hidden_dim)
        g2=jnp.asarray(g2, jnp.float32)[None, :],     # (1, hidden_dim)
        be2=jnp.asarray(be2, jnp.float32)[None, :],
    )


# --------------------------------------------------------------------------- #
# Forward pass
# --------------------------------------------------------------------------- #
def encoder_block(x, prepped, *, out_dtype=jnp.float32):
    """x: (B, input_dim) -> (B, hidden_dim) (PyTorch training-mode forward).
    Pass out_dtype=jnp.bfloat16 to halve the final writeback if downstream allows.

    Note: x, the (B,1024) activations and the weight slabs are kept fully
    resident; for very large B or input_dim a batch-tile grid axis with
    two-pass BN statistics would be needed instead."""
    B, input_dim = x.shape
    hidden_dim = prepped["w2t"].shape[1]
    cap = _vmem_capacity_bytes()
    bf16, f32 = 2, 4

    xb = x.astype(jnp.bfloat16)  # bf16 MXU operand; BN math stays f32 in-kernel.

    # ---- Stage 1: Linear(input_dim, 1024) + BN1 + ReLU  ->  (B, 1024) bf16 ----
    tn1 = _pick_tile(FEAT1, cap)
    res1 = (2 * B * input_dim * bf16        # x (constant index map, 2 buffers)
            + 2 * input_dim * tn1 * bf16    # w1t column slice
            + 2 * 2 * tn1 * f32             # gamma1 / beta1 slices
            + 2 * B * tn1 * bf16)           # output tile
    h = pl.pallas_call(
        _lin_bn_relu_kernel,
        out_shape=jax.ShapeDtypeStruct((B, FEAT1), jnp.bfloat16),
        grid_spec=pltpu.PrefetchScalarGridSpec(
            num_scalar_prefetch=0,
            grid=(FEAT1 // tn1,),
            in_specs=[
                pl.BlockSpec((B, input_dim), lambda j: (0, 0)),   # x (resident)
                pl.BlockSpec((input_dim, tn1), lambda j: (0, j)),  # w1t slice
                pl.BlockSpec((1, tn1), lambda j: (0, j)),          # gamma1
                pl.BlockSpec((1, tn1), lambda j: (0, j)),          # beta1
            ],
            out_specs=pl.BlockSpec((B, tn1), lambda j: (0, j)),
        ),
        compiler_params=pltpu.CompilerParams(
            dimension_semantics=("parallel",),
            vmem_limit_bytes=_vmem_limit(res1, cap),
        ),
    )(xb, prepped["w1t"], prepped["g1"], prepped["be1"])

    # ---- Stage 2: Linear(1024, hidden_dim) + BN2  ->  (B, hidden_dim) ----------
    tn2 = _pick_tile(hidden_dim, cap)
    out_bytes = jnp.dtype(out_dtype).itemsize
    res2 = (2 * B * FEAT1 * bf16            # h (resident)
            + 2 * FEAT1 * tn2 * bf16        # w2t tile
            + 2 * 2 * tn2 * f32             # gamma2 / beta2 slices
            + 2 * B * tn2 * out_bytes)      # output tile
    out = pl.pallas_call(
        _lin_bn_kernel,
        out_shape=jax.ShapeDtypeStruct((B, hidden_dim), out_dtype),
        grid_spec=pltpu.PrefetchScalarGridSpec(
            num_scalar_prefetch=0,
            grid=(hidden_dim // tn2,),
            in_specs=[
                pl.BlockSpec((B, FEAT1), lambda j: (0, 0)),        # h (resident)
                pl.BlockSpec((FEAT1, tn2), lambda j: (0, j)),      # w2t tile
                pl.BlockSpec((1, tn2), lambda j: (0, j)),          # gamma2
                pl.BlockSpec((1, tn2), lambda j: (0, j)),          # beta2
            ],
            out_specs=pl.BlockSpec((B, tn2), lambda j: (0, j)),
        ),
        compiler_params=pltpu.CompilerParams(
            dimension_semantics=("parallel",),
            vmem_limit_bytes=_vmem_limit(res2, cap),
        ),
    )(h, prepped["w2t"], prepped["g2"], prepped["be2"])
    return out


# --------------------------------------------------------------------------- #
# Init + pure-JAX reference (mirrors the PyTorch module)
# --------------------------------------------------------------------------- #
def init_params(key, input_dim, hidden_dim):
    """f32 master params matching the PyTorch module's __init__."""
    k1, k2, k3, k4 = jax.random.split(key, 4)
    # Kaiming-normal (fan_in, relu): std = sqrt(2 / fan_in)
    w1 = jax.random.normal(k1, (FEAT1, input_dim), jnp.float32) * jnp.sqrt(2.0 / input_dim)
    w2 = jax.random.normal(k2, (hidden_dim, FEAT1), jnp.float32) * jnp.sqrt(2.0 / FEAT1)
    # nn.Linear default bias init: U(-1/sqrt(fan_in), 1/sqrt(fan_in))
    b1 = jax.random.uniform(k3, (FEAT1,), jnp.float32,
                            -1.0 / jnp.sqrt(input_dim), 1.0 / jnp.sqrt(input_dim))
    b2 = jax.random.uniform(k4, (hidden_dim,), jnp.float32,
                            -1.0 / jnp.sqrt(FEAT1), 1.0 / jnp.sqrt(FEAT1))
    # BatchNorm1d affine params: gamma=1, beta=0
    g1, be1 = jnp.ones((FEAT1,), jnp.float32), jnp.zeros((FEAT1,), jnp.float32)
    g2, be2 = jnp.ones((hidden_dim,), jnp.float32), jnp.zeros((hidden_dim,), jnp.float32)
    return (w1, b1, g1, be1, w2, b2, g2, be2)


def encoder_block_ref(x, params):
    """Pure-JAX f32 reference mirroring PyTorch training-mode forward."""
    w1, b1, g1, be1, w2, b2, g2, be2 = params
    h = x @ w1.T + b1
    m, v = jnp.mean(h, 0), jnp.var(h, 0)
    h = g1 * (h - m) / jnp.sqrt(v + EPS) + be1
    h = jnp.maximum(h, 0.0)
    y = h @ w2.T + b2
    m2, v2 = jnp.mean(y, 0), jnp.var(y, 0)
    return g2 * (y - m2) / jnp.sqrt(v2 + EPS) + be2
    # TODO(synk): training-mode BatchNorm also updates running_mean/var buffers
    # as a side effect; those buffers do not affect this forward output.


if __name__ == "__main__":
    batch, input_dim, hidden_dim = 16, 128, 256
    key = jax.random.PRNGKey(0)
    kx, kp = jax.random.split(key)

    x = jax.random.normal(kx, (batch, input_dim), jnp.float32)
    params = init_params(kp, input_dim, hidden_dim)
    prepped = prepare_params(params)   # one-time: transpose + bf16 cast

    out = encoder_block(x, prepped)
    jax.block_until_ready(out)

    ref = encoder_block_ref(x, params)
    assert out.shape == (batch, hidden_dim)
    # bf16 MXU operands => looser tolerance vs the f32 reference.
    assert jnp.allclose(out, ref, atol=7e-2, rtol=7e-2), "mismatch vs reference"

    print("KERNEL_OK")
</pallas_src>

<mosaic_0001>
module attributes {stable_mosaic.version = 11 : i64} {
  func.func @_lin_bn_relu_kernel(%arg0: i32, %arg1: memref<16x128xbf16, #tpu.memory_space<vmem>>, %arg2: memref<128x256xbf16, #tpu.memory_space<vmem>>, %arg3: memref<1x256xf32, #tpu.memory_space<vmem>>, %arg4: memref<1x256xf32, #tpu.memory_space<vmem>>, %arg5: memref<16x256xbf16, #tpu.memory_space<vmem>>) attributes {dimension_semantics = [#tpu.dimension_semantics<parallel>], iteration_bounds = array<i64: 4>, scalar_prefetch = 0 : i64, scratch_operands = 0 : i64, tpu.core_type = #tpu.core_type<tc>, window_params = [{pipeline_mode = #tpu.pipeline_mode<synchronous>, transform_indices = @transform_0, window_bounds = array<i64: 16, 128>}, {transform_indices = @transform_1, window_bounds = array<i64: 128, 256>}, {transform_indices = @transform_2, window_bounds = array<i64: 1, 256>}, {transform_indices = @transform_3, window_bounds = array<i64: 1, 256>}, {transform_indices = @transform_4, window_bounds = array<i64: 16, 256>}]} {
    %c0 = arith.constant 0 : index
    %c0_0 = arith.constant 0 : index
    %0 = vector.load %arg1[%c0, %c0_0] : memref<16x128xbf16, #tpu.memory_space<vmem>>, vector<16x128xbf16>
    %c0_1 = arith.constant 0 : index
    %c0_2 = arith.constant 0 : index
    %1 = vector.load %arg2[%c0_1, %c0_2] : memref<128x256xbf16, #tpu.memory_space<vmem>>, vector<128x256xbf16>
    %cst = arith.constant dense<0.000000e+00> : vector<16x256xf32>
    %2 = tpu.matmul %0, %1, %cst {dimension_numbers = #tpu.dot_dimension_numbers<[1], [0], [0], [1], [0, 0, 1, 1], [], []>} : vector<16x128xbf16>, vector<128x256xbf16>, vector<16x256xf32> -> vector<16x256xf32>
    %cst_3 = arith.constant dense<0.000000e+00> : vector<256xf32>
    %3 = vector.multi_reduction <add>, %2, %cst_3 [0] : vector<16x256xf32> to vector<256xf32>
    %4 = vector.shape_cast %3 : vector<256xf32> to vector<1x256xf32>
    %cst_4 = arith.constant 1.600000e+01 : f32
    %5 = vector.broadcast %cst_4 : f32 to vector<1x256xf32>
    %6 = arith.divf %4, %5 : vector<1x256xf32>
    %7 = vector.broadcast %6 : vector<1x256xf32> to vector<16x256xf32>
    %8 = arith.subf %2, %7 : vector<16x256xf32>
    %9 = arith.mulf %8, %8 : vector<16x256xf32>
    %cst_5 = arith.constant dense<0.000000e+00> : vector<256xf32>
    %10 = vector.multi_reduction <add>, %9, %cst_5 [0] : vector<16x256xf32> to vector<256xf32>
    %11 = vector.shape_cast %10 : vector<256xf32> to vector<1x256xf32>
    %cst_6 = arith.constant 1.600000e+01 : f32
    %12 = vector.broadcast %cst_6 : f32 to vector<1x256xf32>
    %13 = arith.divf %11, %12 : vector<1x256xf32>
    %c0_7 = arith.constant 0 : index
    %c0_8 = arith.constant 0 : index
    %14 = vector.load %arg3[%c0_7, %c0_8] : memref<1x256xf32, #tpu.memory_space<vmem>>, vector<1x256xf32>
    %cst_9 = arith.constant 9.99999974E-6 : f32
    %15 = vector.broadcast %cst_9 : f32 to vector<1x256xf32>
    %16 = arith.addf %13, %15 : vector<1x256xf32>
    %17 = math.rsqrt %16 : vector<1x256xf32>
    %18 = arith.mulf %14, %17 : vector<1x256xf32>
    %19 = vector.broadcast %18 : vector<1x256xf32> to vector<16x256xf32>
    %20 = arith.mulf %8, %19 : vector<16x256xf32>
    %c0_10 = arith.constant 0 : index
    %c0_11 = arith.constant 0 : index
    %21 = vector.load %arg4[%c0_10, %c0_11] : memref<1x256xf32, #tpu.memory_space<vmem>>, vector<1x256xf32>
    %22 = vector.broadcast %21 : vector<1x256xf32> to vector<16x256xf32>
    %23 = arith.addf %20, %22 : vector<16x256xf32>
    %cst_12 = arith.constant 0.000000e+00 : f32
    %24 = vector.broadcast %cst_12 : f32 to vector<16x256xf32>
    %25 = arith.maximumf %23, %24 : vector<16x256xf32>
    %26 = arith.truncf %25 : vector<16x256xf32> to vector<16x256xbf16>
    %c0_13 = arith.constant 0 : index
    %c0_14 = arith.constant 0 : index
    %27 = vector.load %arg5[%c0_13, %c0_14] : memref<16x256xbf16, #tpu.memory_space<vmem>>, vector<16x256xbf16>
    tpu.vector_store %arg5[%c0_13, %c0_14], %26 {strides = array<i32>} : memref<16x256xbf16, #tpu.memory_space<vmem>>, vector<16x256xbf16>,
    return
  }
  func.func @transform_0(%arg0: i32) -> (i32, i32) {
    %c0_i32 = arith.constant 0 : i32
    %c0_i32_0 = arith.constant 0 : i32
    %c0_i32_1 = arith.constant 0 : i32
    return %c0_i32, %c0_i32_0 : i32, i32
  }
  func.func @transform_1(%arg0: i32) -> (i32, i32) {
    %c0_i32 = arith.constant 0 : i32
    %c0_i32_0 = arith.constant 0 : i32
    return %c0_i32, %arg0 : i32, i32
  }
  func.func @transform_2(%arg0: i32) -> (i32, i32) {
    %c0_i32 = arith.constant 0 : i32
    %c0_i32_0 = arith.constant 0 : i32
    return %c0_i32, %arg0 : i32, i32
  }
  func.func @transform_3(%arg0: i32) -> (i32, i32) {
    %c0_i32 = arith.constant 0 : i32
    %c0_i32_0 = arith.constant 0 : i32
    return %c0_i32, %arg0 : i32, i32
  }
  func.func @transform_4(%arg0: i32) -> (i32, i32) {
    %c0_i32 = arith.constant 0 : i32
    %c0_i32_0 = arith.constant 0 : i32
    return %c0_i32, %arg0 : i32, i32
  }
}

</mosaic_0001>

<llo_original>
// kernel: tpu_custom_call.1
$region0: #{tpu_custom_call.1}
  #allocation0 [shape = 'u32[]', space=smem, size = 0x4, offset = 0x4, fixed_abs, tag = 'smem constant byte address 0x4 - core index']
  #allocation1 [shape = 'u32[144,128]{1,0:T(1,128)}', space=vmem, size = 0x12000, scoped, tag = 'internal scratch']
  %s0 = inlined_call_operand.hbm [shape: bf16[16,128], index: 0, kind: input, shape index: {}]
  %s1 = inlined_call_operand.hbm [shape: bf16[128,1024], index: 1, kind: input, shape index: {}]
  %s2 = inlined_call_operand.hbm [shape: f32[1,1024], index: 2, kind: input, shape index: {}]
  %s3 = inlined_call_operand.vmem [shape: f32[1,1024], index: 3, kind: input, shape index: {}]
  %s4 = inlined_call_operand.hbm [shape: bf16[16,1024], index: 4, kind: output, shape index: {}]
  %s5 = sld [smem:[#allocation0]]
  $region61: #{tpu_custom_call.1} parent=0
    _
  %s7 = ssub.s32 1, %s5
  %s8 = scalar_select 0, %s7, %s5
  $region1: #{tpu_custom_call.1} parent=0
    #allocation2 [shape = 'u8[4096]{0}', space=vmem, size = 0x1000, scoped, tag = 'input window, operand 0, single buffered']
    #allocation3 [shape = 's32[2]{0}', space=sflag, size = 0x8, scoped, tag = 'scoped memory for tpu_custom_call.1']
    #allocation4 [shape = 's32[2]{0}', space=sflag, size = 0x8, scoped, tag = 'scoped memory for tpu_custom_call.1']
    #allocation5 [shape = 'u8[131072]{0}', space=vmem, size = 0x20000, scoped, tag = 'input window, operand 1']
    #allocation6 [shape = 's32[2]{0}', space=sflag, size = 0x8, scoped, tag = 'scoped memory for tpu_custom_call.1']
    #allocation7 [shape = 'u8[2048]{0}', space=vmem, size = 0x800, scoped, tag = 'input window, operand 2']
    #allocation8 [shape = 'u8[16384]{0}', space=vmem, size = 0x4000, scoped, tag = 'output window, operand 0']
    %9 = vsyncpa [#allocation3], 0
    %10 = vsyncpa [#allocation6], 0
    %s11 = scalar_lea.sflag [#allocation6], 1
    %12 = vsyncpa %s11, 0
    %13 = vsyncpa [#allocation4], 0
    %s14 = scalar_lea.sflag [#allocation4], 1
    %15 = vsyncpa %s14, 0
    loop: start=0, step=1, limit=6
    $region2: #{tpu_custom_call.1} parent=1 // loop_pre_header
      _
    $region3: #{tpu_custom_call.1} parent=1 // loop_header
      %s17 = sphi 0, %s21
      %p18 = scmp.ge.s32.totalorder %s17, 6
      %s25 = sphi 0, %s25
      %s27 = sphi 0, %s25
      %s28 = sphi 0, %s27
      %s42 = sphi 0, %s28
      %s48 = sphi 0, %s50
      %s51 = sphi 0, %s48
      %s52 = sphi 0, %s51
      %s68 = sphi 0, %s52
      %s74 = sphi 0, %s76
      %s77 = sphi 0, %s74
      %s78 = sphi 0, %s77
      %s94 = sphi 0, %s78
      %s100 = sphi 0, %s102
      %s103 = sphi 0, %s100
      %s104 = sphi 0, %s103
      %s120 = sphi 0, %s104
      %s126 = sphi 0, %s128
      %s129 = sphi 0, %s126
      %s130 = sphi 0, %s129
      %s146 = sphi 0, %s130
    $region4: #{tpu_custom_call.1} parent=1 // loop_header_branch
      %20 = sbr.rel (%p18) target = $region8
    $region5: #{tpu_custom_call.1} parent=1 // loop_body
      %s22 = ssub.s32 %s17, 1
      %s23 = ssub.s32 %s17, 2
      %s24 = sadd.s32 %s17, 1
      %s26 = sadd.s32 %s25, 1
      %p29 = scmp.eq.s32.totalorder %s17, 3
      %p30 = scmp.ne.s32.totalorder %s25, %s27
      %p31 = scmp.eq.s32.totalorder %s17, 0
      %p32 = por %p30, %p31
      %p33 = scmp.ne.s32.totalorder %s25, %s27
      %p34 = scmp.eq.s32.totalorder %s22, 3
      %p35 = por %p33, %p34
      %p36 = scmp.ne.s32.totalorder %s27, %s28
      %p37 = scmp.eq.s32.totalorder %s22, 0
      %p38 = por %p36, %p37
      %p39 = scmp.ne.s32.totalorder %s27, %s28
      %p40 = scmp.eq.s32.totalorder %s23, 3
      %p41 = por %p39, %p40
      %p43 = scmp.ne.s32.totalorder %s28, %s42
      %p44 = scmp.eq.s32.totalorder %s23, 0
      %p45 = por %p43, %p44
      %s46 = ssub.s32 %s17, %s24
      %p47 = scmp.eq.s32.totalorder %s46, 0
      %s49 = sadd.s32 %s48, 1
      %s50 = scalar_select %p47, %s48, %s49
      %p53 = pneg %p47
      %p54 = scmp.eq.s32.totalorder %s17, 3
      %p55 = por %p53, %p54
      %p56 = scmp.ne.s32.totalorder %s48, %s51
      %p57 = scmp.eq.s32.totalorder %s17, 0
      %p58 = por %p56, %p57
      %p59 = scmp.ne.s32.totalorder %s48, %s51
      %p60 = scmp.eq.s32.totalorder %s22, 3
      %p61 = por %p59, %p60
      %p62 = scmp.ne.s32.totalorder %s51, %s52
      %p63 = scmp.eq.s32.totalorder %s22, 0
      %p64 = por %p62, %p63
      %p65 = scmp.ne.s32.totalorder %s51, %s52
      %p66 = scmp.eq.s32.totalorder %s23, 3
      %p67 = por %p65, %p66
      %p69 = scmp.ne.s32.totalorder %s52, %s68
      %p70 = scmp.eq.s32.totalorder %s23, 0
      %p71 = por %p69, %p70
      %s72 = ssub.s32 %s17, %s24
      %p73 = scmp.eq.s32.totalorder %s72, 0
      %s75 = sadd.s32 %s74, 1
      %s76 = scalar_select %p73, %s74, %s75
      %p79 = pneg %p73
      %p80 = scmp.eq.s32.totalorder %s17, 3
      %p81 = por %p79, %p80
      %p82 = scmp.ne.s32.totalorder %s74, %s77
      %p83 = scmp.eq.s32.totalorder %s17, 0
      %p84 = por %p82, %p83
      %p85 = scmp.ne.s32.totalorder %s74, %s77
      %p86 = scmp.eq.s32.totalorder %s22, 3
      %p87 = por %p85, %p86
      %p88 = scmp.ne.s32.totalorder %s77, %s78
      %p89 = scmp.eq.s32.totalorder %s22, 0
      %p90 = por %p88, %p89
      %p91 = scmp.ne.s32.totalorder %s77, %s78
      %p92 = scmp.eq.s32.totalorder %s23, 3
      %p93 = por %p91, %p92
      %p95 = scmp.ne.s32.totalorder %s78, %s94
      %p96 = scmp.eq.s32.totalorder %s23, 0
      %p97 = por %p95, %p96
      %s98 = ssub.s32 %s17, %s24
      %p99 = scmp.eq.s32.totalorder %s98, 0
      %s101 = sadd.s32 %s100, 1
      %s102 = scalar_select %p99, %s100, %s101
      %p105 = pneg %p99
      %p106 = scmp.eq.s32.totalorder %s17, 3
      %p107 = por %p105, %p106
      %p108 = scmp.ne.s32.totalorder %s100, %s103
      %p109 = scmp.eq.s32.totalorder %s17, 0
      %p110 = por %p108, %p109
      %p111 = scmp.ne.s32.totalorder %s100, %s103
      %p112 = scmp.eq.s32.totalorder %s22, 3
      %p113 = por %p111, %p112
      %p114 = scmp.ne.s32.totalorder %s103, %s104
      %p115 = scmp.eq.s32.totalorder %s22, 0
      %p116 = por %p114, %p115
      %p117 = scmp.ne.s32.totalorder %s103, %s104
      %p118 = scmp.eq.s32.totalorder %s23, 3
      %p119 = por %p117, %p118
      %p121 = scmp.ne.s32.totalorder %s104, %s120
      %p122 = scmp.eq.s32.totalorder %s23, 0
      %p123 = por %p121, %p122
      %s124 = ssub.s32 %s17, %s24
      %p125 = scmp.eq.s32.totalorder %s124, 0
      %s127 = sadd.s32 %s126, 1
      %s128 = scalar_select %p125, %s126, %s127
      %p131 = pneg %p125
      %p132 = scmp.eq.s32.totalorder %s17, 3
      %p133 = por %p131, %p132
      %p134 = scmp.ne.s32.totalorder %s126, %s129
      %p135 = scmp.eq.s32.totalorder %s17, 0
      %p136 = por %p134, %p135
      %p137 = scmp.ne.s32.totalorder %s126, %s129
      %p138 = scmp.eq.s32.totalorder %s22, 3
      %p139 = por %p137, %p138
      %p140 = scmp.ne.s32.totalorder %s129, %s130
      %p141 = scmp.eq.s32.totalorder %s22, 0
      %p142 = por %p140, %p141
      %p143 = scmp.ne.s32.totalorder %s129, %s130
      %p144 = scmp.eq.s32.totalorder %s23, 3
      %p145 = por %p143, %p144
      %p147 = scmp.ne.s32.totalorder %s130, %s146
      %p148 = scmp.eq.s32.totalorder %s23, 0
      %p149 = por %p147, %p148
      %p150 = scmp.le.s32.totalorder 1, %s17
      %p151 = scmp.lt.s32.totalorder %s17, 5
      %p152 = pnand %p150, %p151
      %p153 = pneg %p152
      // Predicated region
      $region9: #{tpu_custom_call.1} parent=5 // pred_check
        _
      $region10: #{tpu_custom_call.1} parent=5 // pred_check_branch
        %155 = sbr.rel (%p152) target = $region12
      $region11: #{tpu_custom_call.1} parent=5 // pred_region
        %s156 = ssub.s32 %s17, 1
        // Predicated region
        $region13: #{tpu_custom_call.1} parent=11 // pred_check
          %p157 = pneg %p38
        $region14: #{tpu_custom_call.1} parent=11 // pred_check_branch
          %159 = sbr.rel (%p157) target = $region16
        $region15: #{tpu_custom_call.1} parent=11 // pred_region
          %s161 = ssub.s32 128, 128
          %162 = vsyncadd [#allocation3], %s161
          %s163 = sshll.u32 [#allocation2], 4
          %s164 = int_to_ptr.vmem [resolvable:$true] %s163
          %169 = dma.hbm_to_vmem [thread:$0]  %s0, 128, %s164, [#allocation3], 64, 64, 4
        $region16: #{tpu_custom_call.1} parent=11 // pred_fallthru
          _
      $region12: #{tpu_custom_call.1} parent=5 // pred_fallthru
        _
      %p170 = scmp.lt.s32.totalorder %s17, 4
      // Predicated region
      $region17: #{tpu_custom_call.1} parent=5 // pred_check
        %p171 = pneg %p170
      $region18: #{tpu_custom_call.1} parent=5 // pred_check_branch
        %173 = sbr.rel (%p171) target = $region20
      $region19: #{tpu_custom_call.1} parent=5 // pred_region
        // Predicated region
        $region21: #{tpu_custom_call.1} parent=19 // pred_check
          %p174 = pneg %p58
        $region22: #{tpu_custom_call.1} parent=19 // pred_check_branch
          %176 = sbr.rel (%p174) target = $region24
        $region23: #{tpu_custom_call.1} parent=19 // pred_region
          %s177 = sand.u32 %s17, 1
          %s178 = scalar_lea.sflag [#allocation6], %s177
          %s179 = sand.u32 %s48, 1
          %s180 = smul.addr %s179, 128
          %s181 = scalar_lea.vmem [#allocation5], %s180
          %s182 = smul.u32 2, %s17
          %s184 = ssub.s32 2048, 2048
          %185 = vsyncadd %s178, %s184
          %s186 = smul.addr %s182, 64
          %s187 = scalar_lea.hbm %s1, %s186
          %s188 = sshll.u32 %s181, 4
          %s189 = int_to_ptr.vmem [resolvable:$true] %s188
          %194 = dma.hbm_to_vmem [thread:$0]  %s187, 2048, %s189, %s178, 512, 128, 8
        $region24: #{tpu_custom_call.1} parent=19 // pred_fallthru
          _
        // Predicated region
        $region25: #{tpu_custom_call.1} parent=19 // pred_check
          %p195 = pneg %p84
        $region26: #{tpu_custom_call.1} parent=19 // pred_check_branch
          %197 = sbr.rel (%p195) target = $region28
        $region27: #{tpu_custom_call.1} parent=19 // pred_region
          %s198 = sand.u32 %s17, 1
          %s199 = scalar_lea.sflag [#allocation6], %s198
          %s200 = sand.u32 %s74, 1
          %s201 = smul.addr %s200, 2
          %s202 = scalar_lea.vmem [#allocation7], %s201
          %s203 = smul.u32 2, %s17
          %s205 = ssub.s32 32, 32
          %206 = vsyncadd %s199, %s205
          %s207 = smul.addr %s203, 16
          %s208 = scalar_lea.hbm %s2, %s207
          %s210 = sshll.u32 %s202, 4
          %s211 = int_to_ptr.vmem [resolvable:$true] %s210
          %213 = dma.hbm_to_vmem [thread:$0]  %s208, 32, %s211, %s199
        $region28: #{tpu_custom_call.1} parent=19 // pred_fallthru
          _
        // Predicated region
        $region29: #{tpu_custom_call.1} parent=19 // pred_check
          %p214 = pneg %p110
        $region30: #{tpu_custom_call.1} parent=19 // pred_check_branch
          %216 = sbr.rel (%p214) target = $region32
        $region31: #{tpu_custom_call.1} parent=19 // pred_region
          %s217 = smul.u32 2, %s17
          %p218 = scmp.lt.s32.totalorder %s217, 7
          %s219 = scalar_select %p218, %s217, 7
          %s220 = scalar_lea.vmem %s3, %s219
          %s221 = smul.u32 2, %s17
        $region32: #{tpu_custom_call.1} parent=19 // pred_fallthru
          _
      $region20: #{tpu_custom_call.1} parent=5 // pred_fallthru
        _
      %p222 = scmp.le.s32.totalorder 1, %s17
      %p223 = scmp.lt.s32.totalorder %s17, 5
      %p224 = pnand %p222, %p223
      %p225 = pneg %p224
      // Predicated region
      $region33: #{tpu_custom_call.1} parent=5 // pred_check
        _
      $region34: #{tpu_custom_call.1} parent=5 // pred_check_branch
        %227 = sbr.rel (%p224) target = $region36
      $region35: #{tpu_custom_call.1} parent=5 // pred_region
        %s228 = ssub.s32 %s17, 1
        // Predicated region
        $region37: #{tpu_custom_call.1} parent=35 // pred_check
          %p229 = pneg %p38
        $region38: #{tpu_custom_call.1} parent=35 // pred_check_branch
          %231 = sbr.rel (%p229) target = $region40
        $region39: #{tpu_custom_call.1} parent=35 // pred_region
          %232 = dma.done [#allocation3], 128
        $region40: #{tpu_custom_call.1} parent=35 // pred_fallthru
          _
        %s233 = sand.u32 %s22, 1
        %s234 = scalar_lea.sflag [#allocation6], %s233
        %s235 = sand.u32 %s51, 1
        %s236 = smul.addr %s235, 128
        %s237 = scalar_lea.vmem [#allocation5], %s236
        // Predicated region
        $region41: #{tpu_custom_call.1} parent=35 // pred_check
          %p238 = pneg %p64
        $region42: #{tpu_custom_call.1} parent=35 // pred_check_branch
          %240 = sbr.rel (%p238) target = $region44
        $region43: #{tpu_custom_call.1} parent=35 // pred_region
          %241 = dma.done %s234, 2048
        $region44: #{tpu_custom_call.1} parent=35 // pred_fallthru
          _
        %s242 = sand.u32 %s22, 1
        %s243 = scalar_lea.sflag [#allocation6], %s242
        %s244 = sand.u32 %s77, 1
        %s245 = smul.addr %s244, 2
        %s246 = scalar_lea.vmem [#allocation7], %s245
        // Predicated region
        $region45: #{tpu_custom_call.1} parent=35 // pred_check
          %p247 = pneg %p90
        $region46: #{tpu_custom_call.1} parent=35 // pred_check_branch
          %249 = sbr.rel (%p247) target = $region48
        $region47: #{tpu_custom_call.1} parent=35 // pred_region
          %250 = dma.done %s243, 32
        $region48: #{tpu_custom_call.1} parent=35 // pred_fallthru
          _
        %p251 = pneg %p38
        %p252 = pneg %p35
        %s253 = sand.u32 %s22, 1
        %s254 = scalar_lea.sflag [#allocation6], %s253
        %s255 = sand.u32 %s51, 1
        %s256 = smul.addr %s255, 128
        %s257 = scalar_lea.vmem [#allocation5], %s256
        %p258 = pneg %p64
        %p259 = pneg %p61
        %s260 = sand.u32 %s22, 1
        %s261 = scalar_lea.sflag [#allocation6], %s260
        %s262 = sand.u32 %s77, 1
        %s263 = smul.addr %s262, 2
        %s264 = scalar_lea.vmem [#allocation7], %s263
        %p265 = pneg %p90
        %p266 = pneg %p87
        %s267 = smul.u32 2, %s22
        %p268 = scmp.lt.s32.totalorder %s267, 7
        %s269 = scalar_select %p268, %s267, 7
        %s270 = scalar_lea.vmem %s3, %s269
        %p271 = pneg %p116
        %p272 = pneg %p113
        %p273 = pneg %p142
        %p274 = pneg %p139
        %s275 = sand.u32 %s129, 1
        %s276 = scalar_lea.sflag [#allocation4], %s275
        %s277 = sand.u32 %s129, 1
        %s278 = smul.addr %s277, 16
        %s279 = scalar_lea.vmem [#allocation8], %s278
        %s280 = smul.u32 2, %s22
        %s281 = smul.u32 2, %s22
        %s282 = smul.u32 2, %s22
        %p283 = scmp.lt.s32.totalorder %s282, 7
        %s284 = scalar_select %p283, %s282, 7
        %s285 = scalar_lea.vmem %s3, %s284
        %s286 = smul.u32 2, %s22
        %s287 = smul.u32 2, %s22
        %v289 = vld [vmem:[#allocation2] sm:$0xf]
        %v290 = vld [vmem:[#allocation2 + $0x4] sm:$0xf]
        %v291 = vld [vmem:[%s237] sm:$0xff]
        %v292 = vld [vmem:[%s237 + $0x8] sm:$0xff]
        %v293 = vld [vmem:[%s237 + $0x10] sm:$0xff]
        %v294 = vld [vmem:[%s237 + $0x18] sm:$0xff]
        %v295 = vld [vmem:[%s237 + $0x20] sm:$0xff]
        %v296 = vld [vmem:[%s237 + $0x28] sm:$0xff]
        %v297 = vld [vmem:[%s237 + $0x30] sm:$0xff]
        %v298 = vld [vmem:[%s237 + $0x38] sm:$0xff]
        %v299 = vld [vmem:[%s237 + $0x40] sm:$0xff]
        %v300 = vld [vmem:[%s237 + $0x48] sm:$0xff]
        %v301 = vld [vmem:[%s237 + $0x50] sm:$0xff]
        %v302 = vld [vmem:[%s237 + $0x58] sm:$0xff]
        %v303 = vld [vmem:[%s237 + $0x60] sm:$0xff]
        %v304 = vld [vmem:[%s237 + $0x68] sm:$0xff]
        %v305 = vld [vmem:[%s237 + $0x70] sm:$0xff]
        %v306 = vld [vmem:[%s237 + $0x78] sm:$0xff]
        %v309 = vunpack.c.l.b16 %v289
        %v310 = vunpack.c.l.b16 %v290
        %v311 = vpack.c.b16 %v310, %v309
        %v329 = vunpack.c.l.b16 %v291
        %v330 = vunpack.c.h.b16 %v291
        %v331 = vunpack.c.l.b16 %v292
        %v332 = vunpack.c.h.b16 %v292
        %v333 = vunpack.c.l.b16 %v293
        %v334 = vunpack.c.h.b16 %v293
        %v335 = vunpack.c.l.b16 %v294
        %v336 = vunpack.c.h.b16 %v294
        %v337 = vunpack.c.l.b16 %v295
        %v338 = vunpack.c.h.b16 %v295
        %v339 = vunpack.c.l.b16 %v296
        %v340 = vunpack.c.h.b16 %v296
        %v341 = vunpack.c.l.b16 %v297
        %v342 = vunpack.c.h.b16 %v297
        %v343 = vunpack.c.l.b16 %v298
        %v344 = vunpack.c.h.b16 %v298
        %v345 = vunpack.c.l.b16 %v299
        %v346 = vunpack.c.h.b16 %v299
        %v347 = vunpack.c.l.b16 %v300
        %v348 = vunpack.c.h.b16 %v300
        %v349 = vunpack.c.l.b16 %v301
        %v350 = vunpack.c.h.b16 %v301
        %v351 = vunpack.c.l.b16 %v302
        %v352 = vunpack.c.h.b16 %v302
        %v353 = vunpack.c.l.b16 %v303
        %v354 = vunpack.c.h.b16 %v303
        %v355 = vunpack.c.l.b16 %v304
        %v356 = vunpack.c.h.b16 %v304
        %v357 = vunpack.c.l.b16 %v305
        %v358 = vunpack.c.h.b16 %v305
        %v359 = vunpack.c.l.b16 %v306
        %v360 = vunpack.c.h.b16 %v306
        %v361 = vpack.c.b16 %v331, %v329
        %v362 = vpack.c.b16 %v332, %v330
        %v363 = vpack.c.b16 %v335, %v333
        %v364 = vpack.c.b16 %v336, %v334
        %v365 = vpack.c.b16 %v339, %v337
        %v366 = vpack.c.b16 %v340, %v338
        %v367 = vpack.c.b16 %v343, %v341
        %v368 = vpack.c.b16 %v344, %v342
        %v369 = vpack.c.b16 %v347, %v345
        %v370 = vpack.c.b16 %v348, %v346
        %v371 = vpack.c.b16 %v351, %v349
        %v372 = vpack.c.b16 %v352, %v350
        %v373 = vpack.c.b16 %v355, %v353
        %v374 = vpack.c.b16 %v356, %v354
        %v375 = vpack.c.b16 %v359, %v357
        %v376 = vpack.c.b16 %v360, %v358
        %393 = vmatprep.subr.bf16.mxu0 %v362
        %394 = vmatpush1.bf16.msra.mxu0 %v361
        %395 = vmatprep.subr.bf16.mxu0 %v364
        %396 = vmatpush1.bf16.msra.mxu0 %v363
        %397 = vmatprep.subr.bf16.mxu0 %v366
        %398 = vmatpush1.bf16.msra.mxu0 %v365
        %399 = vmatprep.subr.bf16.mxu0 %v368
        %400 = vmatpush1.bf16.msra.mxu0 %v367
        %401 = vmatprep.subr.bf16.mxu0 %v370
        %402 = vmatpush1.bf16.msra.mxu0 %v369
        %403 = vmatprep.subr.bf16.mxu0 %v372
        %404 = vmatpush1.bf16.msra.mxu0 %v371
        %405 = vmatprep.subr.bf16.mxu0 %v374
        %406 = vmatpush1.bf16.msra.mxu0 %v373
        %407 = vmatprep.subr.bf16.mxu0 %v376
        %408 = vmatpush1.bf16.msra.mxu0 %v375
        %409 = vmatprep.subr.bf16.mxu0 0
        %410 = vmatpush1.bf16.msra.mxu0 0
        %411 = vmatprep.subr.bf16.mxu0 0
        %412 = vmatpush1.bf16.msra.mxu0 0
        %413 = vmatprep.subr.bf16.mxu0 0
        %414 = vmatpush1.bf16.msra.mxu0 0
        %415 = vmatprep.subr.bf16.mxu0 0
        %416 = vmatpush1.bf16.msra.mxu0 0
        %417 = vmatprep.subr.bf16.mxu0 0
        %418 = vmatpush1.bf16.msra.mxu0 0
        %419 = vmatprep.subr.bf16.mxu0 0
        %420 = vmatpush1.bf16.msra.mxu0 0
        %421 = vmatprep.subr.bf16.mxu0 0
        %422 = vmatpush1.bf16.msra.mxu0 0
        %423 = vmatprep.subr.bf16.mxu0 0
        %424 = vmatpush1.bf16.msra.mxu0 0
        %425 = vmatprep.mubr.bf16.mxu0 0
        %426 = vmatmul.mubr.bf16.gmra.mrb[0].mxu0 %v311
        %v427 = vpop.f32.mrb[0].mxu0
        %v428 = vadd.f32 0.0, %v427
        %v429 = vpop.f32.mrb[0].mxu0
        %v430 = vadd.f32 0.0, %v429
        %v431 = vpop.f32.mrb[0].mxu0
        %v432 = vadd.f32 0.0, %v431
        %v433 = vpop.f32.mrb[0].mxu0
        %v434 = vadd.f32 0.0, %v433
        %435 = vdwg.mxu0
        %v436 = vadd.f32 %v428, %v432
        %v437 = vrot.slane %v436, 4
        %v438 = vadd.f32 %v436, %v437
        %v439 = vrot.slane %v438, 2
        %v440 = vadd.f32 %v438, %v439
        %v441 = vrot.slane %v440, 1
        %v442 = vadd.f32 %v440, %v441
        %v443 = vadd.f32 %v430, %v434
        %v444 = vrot.slane %v443, 4
        %v445 = vadd.f32 %v443, %v444
        %v446 = vrot.slane %v445, 2
        %v447 = vadd.f32 %v445, %v446
        %v448 = vrot.slane %v447, 1
        %v449 = vadd.f32 %v447, %v448
        %v450 = vrcp.pop 16.0
        %v451 = vmul.f32 %v442, %v450
        %v452 = vmul.f32 %v449, %v450
        %v453 = vsub.f32 %v428, %v451
        %v454 = vsub.f32 %v430, %v452
        %v455 = vsub.f32 %v432, %v451
        %v456 = vsub.f32 %v434, %v452
        %v457 = vmul.f32 %v453, %v453
        %v458 = vmul.f32 %v454, %v454
        %v459 = vmul.f32 %v455, %v455
        %v460 = vmul.f32 %v456, %v456
        %v461 = vadd.f32 %v457, %v459
        %v462 = vrot.slane %v461, 4
        %v463 = vadd.f32 %v461, %v462
        %v464 = vrot.slane %v463, 2
        %v465 = vadd.f32 %v463, %v464
        %v466 = vrot.slane %v465, 1
        %v467 = vadd.f32 %v465, %v466
        %v468 = vadd.f32 %v458, %v460
        %v469 = vrot.slane %v468, 4
        %v470 = vadd.f32 %v468, %v469
        %v471 = vrot.slane %v470, 2
        %v472 = vadd.f32 %v470, %v471
        %v473 = vrot.slane %v472, 1
        %v474 = vadd.f32 %v472, %v473
        %v475 = vmul.f32 %v467, %v450
        %v476 = vmul.f32 %v474, %v450
        %v477 = vld [vmem:[%s246] sm:$0x3]
        %v478 = vadd.f32 %v475, 1e-05
        %v479 = vadd.f32 %v476, 1e-05
        %v480 = vrsqrt.pop %v478
        %v481 = vrsqrt.pop %v479
        %v484 = vcombine.low %v480, %v481
        %v486 = vunpack.c.l.s4 1966171168
        %v487 = vunpack.c.0.s8 %v486
        %v488 = vlaneseq
        %v489 = vshrl.u32 %v488, 7
        %v490 = vsub.s32 %v487, %v489
        %v491 = vrot.slane %v484, %v490
        %v493 = vunpack.c.l.s4 1966171168
        %v494 = vunpack.c.0.s8 %v493
        %v495 = vlaneseq
        %v496 = vshrl.u32 %v495, 7
        %v497 = vsub.s32 %v494, %v496
        %v498 = vrot.slane %v491, %v497
        %v500 = vmul.f32 %v477, %v498
        %v502 = vlaneseq
        %v503 = vshrl.u32 %v502, 7
        %v504 = vsub.s32 0, %v503
        %v505 = vrot.slane %v500, %v504
        %v506 = vlaneseq
        %v507 = vshrl.u32 %v506, 7
        %v508 = vsub.s32 1, %v507
        %v509 = vrot.slane %v500, %v508
        %v512 = vmul.f32 %v453, %v505
        %v513 = vmul.f32 %v454, %v509
        %v514 = vmul.f32 %v455, %v505
        %v515 = vmul.f32 %v456, %v509
        %v516 = vld [vmem:[%s285] sm:$0x3]
        %v518 = vlaneseq
        %v519 = vshrl.u32 %v518, 7
        %v520 = vsub.s32 0, %v519
        %v521 = vrot.slane %v516, %v520
        %v522 = vlaneseq
        %v523 = vshrl.u32 %v522, 7
        %v524 = vsub.s32 1, %v523
        %v525 = vrot.slane %v516, %v524
        %v528 = vadd.f32 %v512, %v521
        %v529 = vadd.f32 %v513, %v525
        %v530 = vadd.f32 %v514, %v521
        %v531 = vadd.f32 %v515, %v525
        %v532 = vmax.f32 %v528, 0.0
        %v533 = vmax.f32 %v529, 0.0
        %v534 = vmax.f32 %v530, 0.0
        %v535 = vmax.f32 %v531, 0.0
        %v536 = vpack.c.bf16 %v534, %v532
        %v537 = vpack.c.bf16 %v535, %v533
        %v540 = vunpack.c.l.b16 %v536
        %v541 = vunpack.c.l.b16 %v537
        %v542 = vunpack.c.h.b16 %v536
        %v543 = vunpack.c.h.b16 %v537
        %v544 = vpack.c.b16 %v541, %v540
        %v545 = vpack.c.b16 %v543, %v542
        %548 = vst [vmem:[%s279] sm:$0xff] %v544
        %549 = vst [vmem:[%s279 + $0x8] sm:$0xff] %v545
        %s550 = sand.u32 %s129, 1
        %s551 = scalar_lea.sflag [#allocation4], %s550
        %s552 = sand.u32 %s129, 1
        %s553 = smul.addr %s552, 16
        %s554 = scalar_lea.vmem [#allocation8], %s553
        // Predicated region
        $region49: #{tpu_custom_call.1} parent=35 // pred_check
          %p555 = pneg %p139
        $region50: #{tpu_custom_call.1} parent=35 // pred_check_branch
          %557 = sbr.rel (%p555) target = $region52
        $region51: #{tpu_custom_call.1} parent=35 // pred_region
          %s558 = smul.u32 2, %s22
          %s560 = ssub.s32 256, 256
          %561 = vsyncadd %s551, %s560
          %s562 = smul.addr %s558, 64
          %s563 = scalar_lea.hbm %s4, %s562
          %s564 = sshll.u32 %s554, 4
          %s565 = int_to_ptr.vmem [resolvable:$true] %s564
          %570 = dma.vmem_to_hbm [thread:$0]  %s565, 256, %s563, %s551, 128, 512, 8
        $region52: #{tpu_custom_call.1} parent=35 // pred_fallthru
          _
      $region36: #{tpu_custom_call.1} parent=5 // pred_fallthru
        _
      %p571 = scmp.le.s32.totalorder 2, %s17
      // Predicated region
      $region53: #{tpu_custom_call.1} parent=5 // pred_check
        %p572 = pneg %p571
      $region54: #{tpu_custom_call.1} parent=5 // pred_check_branch
        %574 = sbr.rel (%p572) target = $region56
      $region55: #{tpu_custom_call.1} parent=5 // pred_region
        %s575 = ssub.s32 %s17, 2
        // Predicated region
        $region57: #{tpu_custom_call.1} parent=55 // pred_check
          %p576 = pneg %p145
        $region58: #{tpu_custom_call.1} parent=55 // pred_check_branch
          %578 = sbr.rel (%p576) target = $region60
        $region59: #{tpu_custom_call.1} parent=55 // pred_region
          %s579 = sand.u32 %s130, 1
          %s580 = scalar_lea.sflag [#allocation4], %s579
          %s581 = sand.u32 %s130, 1
          %s582 = smul.addr %s581, 16
          %s583 = scalar_lea.vmem [#allocation8], %s582
          %584 = dma.done %s580, 256
        $region60: #{tpu_custom_call.1} parent=55 // pred_fallthru
          _
      $region56: #{tpu_custom_call.1} parent=5 // pred_fallthru
        _
    $region6: #{tpu_custom_call.1} parent=1 // loop_footer
      %s21 = sadd.s32 1, %s17
    $region7: #{tpu_custom_call.1} parent=1 // loop_footer_branch
      %16 = sbr.rel target = $region3
    $region8: #{tpu_custom_call.1} parent=1 // loop_exit
      _
    %585 = vsyncpa [#allocation3], 1
    %s586 = scalar_lea.sflag [#allocation3], 1
    %587 = vsyncpa %s586, 1
    %588 = vsyncpa [#allocation6], 1
    %s589 = scalar_lea.sflag [#allocation6], 1
    %590 = vsyncpa %s589, 1
    %591 = vsyncpa [#allocation4], 1
    %s592 = scalar_lea.sflag [#allocation4], 1
    %593 = vsyncpa %s592, 1

</llo_original>
